<compile_context>
chip_gen: v5e
topology: v5e:2x2
jax: 0.10.0
libtpu: 0.0.40
codegen_flags: <defaults>
</compile_context>

<pallas_src>
import functools

import jax
import jax.numpy as jnp
from jax.experimental import pallas as pl
from jax.experimental.pallas import tpu as pltpu

INPUT_LAYER = 512
ACTOR_HIDDEN = 256
LANE = 128


def _actor_kernel(x_ref,
                  w1_ref, b1_ref,
                  w2_ref, b2_ref,
                  w3_ref, b3_ref,
                  w4_ref, b4_ref,
                  out_ref):
    # All four layers fused per batch tile.  Weights are bf16 and consumed
    # directly by the MXU; activations are down-cast to bf16 immediately
    # before each dot while accumulation / bias-add / ReLU stay f32.
    x = x_ref[...].astype(jnp.bfloat16)
    h = jnp.dot(x, w1_ref[...], preferred_element_type=jnp.float32) + b1_ref[...]
    h = jnp.maximum(h, 0.0).astype(jnp.bfloat16)
    h = jnp.dot(h, w2_ref[...], preferred_element_type=jnp.float32) + b2_ref[...]
    h = jnp.maximum(h, 0.0).astype(jnp.bfloat16)
    h = jnp.dot(h, w3_ref[...], preferred_element_type=jnp.float32) + b3_ref[...]
    h = jnp.maximum(h, 0.0).astype(jnp.bfloat16)
    mu = jnp.dot(h, w4_ref[...], preferred_element_type=jnp.float32) + b4_ref[...]
    out_ref[...] = mu.astype(out_ref.dtype)


def pt_actor_forward(x, params, action_dim, *, block_b=2048):
    """x: [B, state_dim] float32.  params: prepared dict (see prepare_params).

    Returns [B, action_dim] float32.
    """
    assert block_b % 8 == 0
    x = x.astype(jnp.float32)
    B, state_dim = x.shape
    in_pad = params["w1"].shape[0]           # 128-padded state width
    out_pad = params["w4"].shape[1]          # 128-padded action width
    assert in_pad >= state_dim

    # Pad batch to a sublane multiple and pick a batch tile.  Prefer at least
    # two grid steps so dimension_semantics=("parallel",) can shard the batch
    # across v7x's two TensorCores; cap the tile at block_b.
    B8 = pl.cdiv(B, 8) * 8
    if B8 >= 16:
        half8 = pl.cdiv(pl.cdiv(B8, 2), 8) * 8
        TB = min(block_b, half8)
    else:
        TB = B8
    n_b = pl.cdiv(B8, TB)
    Bp = n_b * TB

    pad_rows = Bp - B
    pad_cols = in_pad - state_dim
    if pad_rows or pad_cols:
        x = jnp.pad(x, ((0, pad_rows), (0, pad_cols)))

    weight_args = (params["w1"], params["b1"],
                   params["w2"], params["b2"],
                   params["w3"], params["b3"],
                   params["w4"], params["b4"])

    flops = 2 * Bp * (in_pad * INPUT_LAYER
                      + INPUT_LAYER * ACTOR_HIDDEN
                      + ACTOR_HIDDEN * ACTOR_HIDDEN
                      + ACTOR_HIDDEN * out_pad)
    bytes_accessed = (x.size * x.dtype.itemsize
                      + Bp * out_pad * 4
                      + sum(int(a.size) * a.dtype.itemsize for a in weight_args))

    def _weight_spec(arr):
        # Constant block index across the batch grid -> weights stay resident
        # in VMEM for the whole call (no per-step re-DMA).
        return pl.BlockSpec(arr.shape, lambda i: (0, 0))

    in_specs = ([pl.BlockSpec((TB, in_pad), lambda i: (i, 0))]
                + [_weight_spec(a) for a in weight_args])

    out = pl.pallas_call(
        _actor_kernel,
        out_shape=jax.ShapeDtypeStruct((Bp, out_pad), jnp.float32),
        grid=(n_b,),
        in_specs=in_specs,
        out_specs=pl.BlockSpec((TB, out_pad), lambda i: (i, 0)),
        compiler_params=pltpu.CompilerParams(
            dimension_semantics=("parallel",)),
        cost_estimate=pl.CostEstimate(flops=flops,
                                      transcendentals=0,
                                      bytes_accessed=bytes_accessed),
    )(x, *weight_args)
    return out[:B, :action_dim]


# ----------------------------- parameter setup -----------------------------

def _xavier_normal(key, fan_in, fan_out):
    std = (2.0 / (fan_in + fan_out)) ** 0.5
    return std * jax.random.normal(key, (fan_in, fan_out), dtype=jnp.float32)


def _bias_uniform(key, fan_in, fan_out):
    # PyTorch nn.Linear default bias init: U(-1/sqrt(fan_in), 1/sqrt(fan_in))
    bound = 1.0 / (fan_in ** 0.5)
    return jax.random.uniform(key, (1, fan_out), dtype=jnp.float32,
                              minval=-bound, maxval=bound)


def init_params(key, state_dim, action_dim):
    ks = jax.random.split(key, 8)
    dims = [(state_dim, INPUT_LAYER),
            (INPUT_LAYER, ACTOR_HIDDEN),
            (ACTOR_HIDDEN, ACTOR_HIDDEN),
            (ACTOR_HIDDEN, action_dim)]
    params = {}
    for i, (fi, fo) in enumerate(dims, start=1):
        params[f"w{i}"] = _xavier_normal(ks[2 * (i - 1)], fi, fo)
        params[f"b{i}"] = _bias_uniform(ks[2 * (i - 1) + 1], fi, fo)
    return params


def prepare_params(raw):
    """Cast weights to bf16 (native MXU input, halves weight DMA), pad the
    first layer's input dim and the final layer's output dim to 128-lane
    multiples (aligned K / unmasked vector stores).  Biases stay f32."""
    p = {}
    state_dim = raw["w1"].shape[0]
    in_pad = pl.cdiv(state_dim, LANE) * LANE
    p["w1"] = jnp.pad(raw["w1"], ((0, in_pad - state_dim), (0, 0))
                      ).astype(jnp.bfloat16)
    p["b1"] = raw["b1"].astype(jnp.float32)
    for i in (2, 3):
        p[f"w{i}"] = raw[f"w{i}"].astype(jnp.bfloat16)
        p[f"b{i}"] = raw[f"b{i}"].astype(jnp.float32)
    action_dim = raw["w4"].shape[1]
    out_pad = pl.cdiv(action_dim, LANE) * LANE
    pad = out_pad - action_dim
    p["w4"] = jnp.pad(raw["w4"], ((0, 0), (0, pad))).astype(jnp.bfloat16)
    p["b4"] = jnp.pad(raw["b4"], ((0, 0), (0, pad))).astype(jnp.float32)
    return p


# ------------------------------- reference ---------------------------------

def _reference(x, prepared, action_dim):
    """Pure-JAX reference mirroring the kernel numerics: bf16 weights, bf16
    activation operands, f32 accumulation / bias / ReLU."""
    in_pad = prepared["w1"].shape[0]
    xb = jnp.pad(x.astype(jnp.float32),
                 ((0, 0), (0, in_pad - x.shape[1]))).astype(jnp.bfloat16)
    h = jnp.maximum(jnp.dot(xb, prepared["w1"],
                            preferred_element_type=jnp.float32)
                    + prepared["b1"], 0.0)
    h = jnp.maximum(jnp.dot(h.astype(jnp.bfloat16), prepared["w2"],
                            preferred_element_type=jnp.float32)
                    + prepared["b2"], 0.0)
    h = jnp.maximum(jnp.dot(h.astype(jnp.bfloat16), prepared["w3"],
                            preferred_element_type=jnp.float32)
                    + prepared["b3"], 0.0)
    mu = jnp.dot(h.astype(jnp.bfloat16), prepared["w4"],
                 preferred_element_type=jnp.float32) + prepared["b4"]
    return mu[:, :action_dim]


if __name__ == "__main__":
    key = jax.random.PRNGKey(0)
    k_param, k_x1, k_x2 = jax.random.split(key, 3)

    state_dim = 32      # state_size = (32,)  -> Linear path of state_fc1
    action_dim = 8      # action_size = (8,)

    raw_params = init_params(k_param, state_dim, action_dim)
    params = prepare_params(raw_params)
    fwd = functools.partial(pt_actor_forward, action_dim=action_dim)

    # Small single-tile case (grid=(1,)).
    batch = 8
    x = jax.random.normal(k_x1, (batch, state_dim), dtype=jnp.float32)
    out = jax.block_until_ready(fwd(x, params))
    ref = _reference(x, params, action_dim)
    assert out.shape == (batch, action_dim)
    assert jnp.allclose(out, ref, atol=1e-2, rtol=1e-2), (
        float(jnp.max(jnp.abs(out - ref))))

    # Multi-tile case (grid splits the batch into >= 2 tiles).
    batch2 = 48
    x2 = jax.random.normal(k_x2, (batch2, state_dim), dtype=jnp.float32)
    out2 = jax.block_until_ready(fwd(x2, params))
    ref2 = _reference(x2, params, action_dim)
    assert out2.shape == (batch2, action_dim)
    assert jnp.allclose(out2, ref2, atol=1e-2, rtol=1e-2), (
        float(jnp.max(jnp.abs(out2 - ref2))))

    print("KERNEL_OK")
</pallas_src>

<mosaic_0001>
module attributes {stable_mosaic.version = 11 : i64} {
  func.func @_actor_kernel(%arg0: i32, %arg1: memref<8x128xf32, #tpu.memory_space<vmem>>, %arg2: memref<128x512xbf16, #tpu.memory_space<vmem>>, %arg3: memref<1x512xf32, #tpu.memory_space<vmem>>, %arg4: memref<512x256xbf16, #tpu.memory_space<vmem>>, %arg5: memref<1x256xf32, #tpu.memory_space<vmem>>, %arg6: memref<256x256xbf16, #tpu.memory_space<vmem>>, %arg7: memref<1x256xf32, #tpu.memory_space<vmem>>, %arg8: memref<256x128xbf16, #tpu.memory_space<vmem>>, %arg9: memref<1x128xf32, #tpu.memory_space<vmem>>, %arg10: memref<8x128xf32, #tpu.memory_space<vmem>>) attributes {dimension_semantics = [#tpu.dimension_semantics<parallel>], iteration_bounds = array<i64: 1>, scalar_prefetch = 0 : i64, scratch_operands = 0 : i64, tpu.core_type = #tpu.core_type<tc>, window_params = [{transform_indices = @transform_0, window_bounds = array<i64: 8, 128>}, {pipeline_mode = #tpu.pipeline_mode<synchronous>, transform_indices = @transform_1, window_bounds = array<i64: 128, 512>}, {pipeline_mode = #tpu.pipeline_mode<synchronous>, transform_indices = @transform_2, window_bounds = array<i64: 1, 512>}, {pipeline_mode = #tpu.pipeline_mode<synchronous>, transform_indices = @transform_3, window_bounds = array<i64: 512, 256>}, {pipeline_mode = #tpu.pipeline_mode<synchronous>, transform_indices = @transform_4, window_bounds = array<i64: 1, 256>}, {pipeline_mode = #tpu.pipeline_mode<synchronous>, transform_indices = @transform_5, window_bounds = array<i64: 256, 256>}, {pipeline_mode = #tpu.pipeline_mode<synchronous>, transform_indices = @transform_6, window_bounds = array<i64: 1, 256>}, {pipeline_mode = #tpu.pipeline_mode<synchronous>, transform_indices = @transform_7, window_bounds = array<i64: 256, 128>}, {pipeline_mode = #tpu.pipeline_mode<synchronous>, transform_indices = @transform_8, window_bounds = array<i64: 1, 128>}, {transform_indices = @transform_9, window_bounds = array<i64: 8, 128>}]} {
    %c0 = arith.constant 0 : index
    %c0_0 = arith.constant 0 : index
    %0 = vector.load %arg1[%c0, %c0_0] : memref<8x128xf32, #tpu.memory_space<vmem>>, vector<8x128xf32>
    %1 = arith.truncf %0 : vector<8x128xf32> to vector<8x128xbf16>
    %c0_1 = arith.constant 0 : index
    %c0_2 = arith.constant 0 : index
    %2 = vector.load %arg2[%c0_1, %c0_2] : memref<128x512xbf16, #tpu.memory_space<vmem>>, vector<128x512xbf16>
    %cst = arith.constant dense<0.000000e+00> : vector<8x512xf32>
    %3 = tpu.matmul %1, %2, %cst {dimension_numbers = #tpu.dot_dimension_numbers<[1], [0], [0], [1], [0, 0, 1, 1], [], []>} : vector<8x128xbf16>, vector<128x512xbf16>, vector<8x512xf32> -> vector<8x512xf32>
    %c0_3 = arith.constant 0 : index
    %c0_4 = arith.constant 0 : index
    %4 = vector.load %arg3[%c0_3, %c0_4] : memref<1x512xf32, #tpu.memory_space<vmem>>, vector<1x512xf32>
    %5 = vector.broadcast %4 : vector<1x512xf32> to vector<8x512xf32>
    %6 = arith.addf %3, %5 : vector<8x512xf32>
    %cst_5 = arith.constant 0.000000e+00 : f32
    %7 = vector.broadcast %cst_5 : f32 to vector<8x512xf32>
    %8 = arith.maximumf %6, %7 : vector<8x512xf32>
    %9 = arith.truncf %8 : vector<8x512xf32> to vector<8x512xbf16>
    %c0_6 = arith.constant 0 : index
    %c0_7 = arith.constant 0 : index
    %10 = vector.load %arg4[%c0_6, %c0_7] : memref<512x256xbf16, #tpu.memory_space<vmem>>, vector<512x256xbf16>
    %cst_8 = arith.constant dense<0.000000e+00> : vector<8x256xf32>
    %11 = tpu.matmul %9, %10, %cst_8 {dimension_numbers = #tpu.dot_dimension_numbers<[1], [0], [0], [1], [0, 0, 1, 1], [], []>} : vector<8x512xbf16>, vector<512x256xbf16>, vector<8x256xf32> -> vector<8x256xf32>
    %c0_9 = arith.constant 0 : index
    %c0_10 = arith.constant 0 : index
    %12 = vector.load %arg5[%c0_9, %c0_10] : memref<1x256xf32, #tpu.memory_space<vmem>>, vector<1x256xf32>
    %13 = vector.broadcast %12 : vector<1x256xf32> to vector<8x256xf32>
    %14 = arith.addf %11, %13 : vector<8x256xf32>
    %cst_11 = arith.constant 0.000000e+00 : f32
    %15 = vector.broadcast %cst_11 : f32 to vector<8x256xf32>
    %16 = arith.maximumf %14, %15 : vector<8x256xf32>
    %17 = arith.truncf %16 : vector<8x256xf32> to vector<8x256xbf16>
    %c0_12 = arith.constant 0 : index
    %c0_13 = arith.constant 0 : index
    %18 = vector.load %arg6[%c0_12, %c0_13] : memref<256x256xbf16, #tpu.memory_space<vmem>>, vector<256x256xbf16>
    %cst_14 = arith.constant dense<0.000000e+00> : vector<8x256xf32>
    %19 = tpu.matmul %17, %18, %cst_14 {dimension_numbers = #tpu.dot_dimension_numbers<[1], [0], [0], [1], [0, 0, 1, 1], [], []>} : vector<8x256xbf16>, vector<256x256xbf16>, vector<8x256xf32> -> vector<8x256xf32>
    %c0_15 = arith.constant 0 : index
    %c0_16 = arith.constant 0 : index
    %20 = vector.load %arg7[%c0_15, %c0_16] : memref<1x256xf32, #tpu.memory_space<vmem>>, vector<1x256xf32>
    %21 = vector.broadcast %20 : vector<1x256xf32> to vector<8x256xf32>
    %22 = arith.addf %19, %21 : vector<8x256xf32>
    %cst_17 = arith.constant 0.000000e+00 : f32
    %23 = vector.broadcast %cst_17 : f32 to vector<8x256xf32>
    %24 = arith.maximumf %22, %23 : vector<8x256xf32>
    %25 = arith.truncf %24 : vector<8x256xf32> to vector<8x256xbf16>
    %c0_18 = arith.constant 0 : index
    %c0_19 = arith.constant 0 : index
    %26 = vector.load %arg8[%c0_18, %c0_19] : memref<256x128xbf16, #tpu.memory_space<vmem>>, vector<256x128xbf16>
    %cst_20 = arith.constant dense<0.000000e+00> : vector<8x128xf32>
    %27 = tpu.matmul %25, %26, %cst_20 {dimension_numbers = #tpu.dot_dimension_numbers<[1], [0], [0], [1], [0, 0, 1, 1], [], []>} : vector<8x256xbf16>, vector<256x128xbf16>, vector<8x128xf32> -> vector<8x128xf32>
    %c0_21 = arith.constant 0 : index
    %c0_22 = arith.constant 0 : index
    %28 = vector.load %arg9[%c0_21, %c0_22] : memref<1x128xf32, #tpu.memory_space<vmem>>, vector<1x128xf32>
    %29 = vector.broadcast %28 : vector<1x128xf32> to vector<8x128xf32>
    %30 = arith.addf %27, %29 : vector<8x128xf32>
    %c0_23 = arith.constant 0 : index
    %c0_24 = arith.constant 0 : index
    %31 = vector.load %arg10[%c0_23, %c0_24] : memref<8x128xf32, #tpu.memory_space<vmem>>, vector<8x128xf32>
    tpu.vector_store %arg10[%c0_23, %c0_24], %30 {strides = array<i32>} : memref<8x128xf32, #tpu.memory_space<vmem>>, vector<8x128xf32>,
    return
  }
  func.func @transform_0(%arg0: i32) -> (i32, i32) {
    %c0_i32 = arith.constant 0 : i32
    %c0_i32_0 = arith.constant 0 : i32
    return %arg0, %c0_i32 : i32, i32
  }
  func.func @transform_1(%arg0: i32) -> (i32, i32) {
    %c0_i32 = arith.constant 0 : i32
    %c0_i32_0 = arith.constant 0 : i32
    %c0_i32_1 = arith.constant 0 : i32
    return %c0_i32, %c0_i32_0 : i32, i32
  }
  func.func @transform_2(%arg0: i32) -> (i32, i32) {
    %c0_i32 = arith.constant 0 : i32
    %c0_i32_0 = arith.constant 0 : i32
    %c0_i32_1 = arith.constant 0 : i32
    return %c0_i32, %c0_i32_0 : i32, i32
  }
  func.func @transform_3(%arg0: i32) -> (i32, i32) {
    %c0_i32 = arith.constant 0 : i32
    %c0_i32_0 = arith.constant 0 : i32
    %c0_i32_1 = arith.constant 0 : i32
    return %c0_i32, %c0_i32_0 : i32, i32
  }
  func.func @transform_4(%arg0: i32) -> (i32, i32) {
    %c0_i32 = arith.constant 0 : i32
    %c0_i32_0 = arith.constant 0 : i32
    %c0_i32_1 = arith.constant 0 : i32
    return %c0_i32, %c0_i32_0 : i32, i32
  }
  func.func @transform_5(%arg0: i32) -> (i32, i32) {
    %c0_i32 = arith.constant 0 : i32
    %c0_i32_0 = arith.constant 0 : i32
    %c0_i32_1 = arith.constant 0 : i32
    return %c0_i32, %c0_i32_0 : i32, i32
  }
  func.func @transform_6(%arg0: i32) -> (i32, i32) {
    %c0_i32 = arith.constant 0 : i32
    %c0_i32_0 = arith.constant 0 : i32
    %c0_i32_1 = arith.constant 0 : i32
    return %c0_i32, %c0_i32_0 : i32, i32
  }
  func.func @transform_7(%arg0: i32) -> (i32, i32) {
    %c0_i32 = arith.constant 0 : i32
    %c0_i32_0 = arith.constant 0 : i32
    %c0_i32_1 = arith.constant 0 : i32
    return %c0_i32, %c0_i32_0 : i32, i32
  }
  func.func @transform_8(%arg0: i32) -> (i32, i32) {
    %c0_i32 = arith.constant 0 : i32
    %c0_i32_0 = arith.constant 0 : i32
    %c0_i32_1 = arith.constant 0 : i32
    return %c0_i32, %c0_i32_0 : i32, i32
  }
  func.func @transform_9(%arg0: i32) -> (i32, i32) {
    %c0_i32 = arith.constant 0 : i32
    %c0_i32_0 = arith.constant 0 : i32
    return %arg0, %c0_i32 : i32, i32
  }
}

</mosaic_0001>

<llo_original>
// kernel: tpu_custom_call.1
$region0: #{tpu_custom_call.1}
  #allocation0 [shape = 'u32[]', space=smem, size = 0x4, offset = 0x4, fixed_abs, tag = 'smem constant byte address 0x4 - core index']
  #allocation1 [shape = 'u32[72,128]{1,0:T(1,128)}', space=vmem, size = 0x9000, scoped, tag = 'internal scratch']
  %s0 = inlined_call_operand.hbm [shape: f32[8,128], index: 0, kind: input, shape index: {}]
  %s1 = inlined_call_operand.hbm [shape: bf16[128,512], index: 1, kind: input, shape index: {}]
  %s2 = inlined_call_operand.hbm [shape: f32[1,512], index: 2, kind: input, shape index: {}]
  %s3 = inlined_call_operand.hbm [shape: bf16[512,256], index: 3, kind: input, shape index: {}]
  %s4 = inlined_call_operand.vmem [shape: f32[1,256], index: 4, kind: input, shape index: {}]
  %s5 = inlined_call_operand.hbm [shape: bf16[256,256], index: 5, kind: input, shape index: {}]
  %s6 = inlined_call_operand.vmem [shape: f32[1,256], index: 6, kind: input, shape index: {}]
  %s7 = inlined_call_operand.hbm [shape: bf16[256,128], index: 7, kind: input, shape index: {}]
  %s8 = inlined_call_operand.vmem [shape: f32[1,128], index: 8, kind: input, shape index: {}]
  %s9 = inlined_call_operand.hbm [shape: f32[8,128], index: 9, kind: output, shape index: {}]
  %s10 = sld [smem:[#allocation0]]
  $region70: #{tpu_custom_call.1} parent=0
    _
  %s12 = ssub.s32 1, %s10
  %s13 = scalar_select 0, %s12, %s10
  $region1: #{tpu_custom_call.1} parent=0
    #allocation2 [shape = 'u8[4096]{0}', space=vmem, size = 0x1000, scoped, tag = 'input window, operand 0, single buffered']
    #allocation3 [shape = 's32[1]{0}', space=sflag, size = 0x4, scoped, tag = 'scoped memory for tpu_custom_call.1']
    #allocation4 [shape = 's32[1]{0}', space=sflag, size = 0x4, scoped, tag = 'scoped memory for tpu_custom_call.1']
    #allocation5 [shape = 'u8[131072]{0}', space=vmem, size = 0x20000, scoped, tag = 'input window, operand 1, single buffered']
    #allocation6 [shape = 's32[1]{0}', space=sflag, size = 0x4, scoped, tag = 'scoped memory for tpu_custom_call.1']
    #allocation7 [shape = 'u8[2048]{0}', space=vmem, size = 0x800, scoped, tag = 'input window, operand 2, single buffered']
    #allocation8 [shape = 'u8[262144]{0}', space=vmem, size = 0x40000, scoped, tag = 'input window, operand 3, single buffered']
    #allocation9 [shape = 's32[1]{0}', space=sflag, size = 0x4, scoped, tag = 'scoped memory for tpu_custom_call.1']
    #allocation10 [shape = 'u8[131072]{0}', space=vmem, size = 0x20000, scoped, tag = 'input window, operand 5, single buffered']
    #allocation11 [shape = 'u8[65536]{0}', space=vmem, size = 0x10000, scoped, tag = 'input window, operand 7, single buffered']
    #allocation12 [shape = 's32[1]{0}', space=sflag, size = 0x4, scoped, tag = 'scoped memory for tpu_custom_call.1']
    #allocation13 [shape = 'u8[4096]{0}', space=vmem, size = 0x1000, scoped, tag = 'output window, operand 0, single buffered']
    %14 = vsyncpa [#allocation3], 0
    %15 = vsyncpa [#allocation6], 0
    %16 = vsyncpa [#allocation9], 0
    %17 = vsyncpa [#allocation12], 0
    %18 = vsyncpa [#allocation4], 0
    // Predicated region
    $region2: #{tpu_custom_call.1} parent=1 // pred_check
      _
    $region3: #{tpu_custom_call.1} parent=1 // pred_check_branch
      %20 = sbr.rel (0) target = $region5
    $region4: #{tpu_custom_call.1} parent=1 // pred_region
      %22 = vsyncadd [#allocation3], 0
      %s24 = sshll.u32 %s0, 4
      %s25 = int_to_ptr.hbm [resolvable:$true] %s24
      %s26 = sshll.u32 [#allocation2], 4
      %s27 = int_to_ptr.vmem [resolvable:$true] %s26
      %29 = dma.hbm_to_vmem [thread:$0]  %s25, 128, %s27, [#allocation3]
    $region5: #{tpu_custom_call.1} parent=1 // pred_fallthru
      _
    // Predicated region
    $region6: #{tpu_custom_call.1} parent=1 // pred_check
      _
    $region7: #{tpu_custom_call.1} parent=1 // pred_check_branch
      %31 = sbr.rel (0) target = $region9
    $region8: #{tpu_custom_call.1} parent=1 // pred_region
      %33 = vsyncadd [#allocation6], 0
      %s34 = sshll.u32 %s1, 4
      %s35 = int_to_ptr.hbm [resolvable:$true] %s34
      %s36 = sshll.u32 [#allocation5], 4
      %s37 = int_to_ptr.vmem [resolvable:$true] %s36
      %42 = dma.hbm_to_vmem [thread:$0]  %s35, 4096, %s37, [#allocation6], 256, 256, 16
    $region9: #{tpu_custom_call.1} parent=1 // pred_fallthru
      _
    // Predicated region
    $region10: #{tpu_custom_call.1} parent=1 // pred_check
      _
    $region11: #{tpu_custom_call.1} parent=1 // pred_check_branch
      %44 = sbr.rel (0) target = $region13
    $region12: #{tpu_custom_call.1} parent=1 // pred_region
      %46 = vsyncadd [#allocation6], 0
      %s48 = sshll.u32 %s2, 4
      %s49 = int_to_ptr.hbm [resolvable:$true] %s48
      %s50 = sshll.u32 [#allocation7], 4
      %s51 = int_to_ptr.vmem [resolvable:$true] %s50
      %53 = dma.hbm_to_vmem [thread:$0]  %s49, 64, %s51, [#allocation6]
    $region13: #{tpu_custom_call.1} parent=1 // pred_fallthru
      _
    // Predicated region
    $region14: #{tpu_custom_call.1} parent=1 // pred_check
      _
    $region15: #{tpu_custom_call.1} parent=1 // pred_check_branch
      %55 = sbr.rel (0) target = $region17
    $region16: #{tpu_custom_call.1} parent=1 // pred_region
      %57 = vsyncadd [#allocation9], 0
      %s58 = sshll.u32 %s3, 4
      %s59 = int_to_ptr.hbm [resolvable:$true] %s58
      %s60 = sshll.u32 [#allocation8], 4
      %s61 = int_to_ptr.vmem [resolvable:$true] %s60
      %66 = dma.hbm_to_vmem [thread:$0]  %s59, 8192, %s61, [#allocation9], 128, 128, 8
    $region17: #{tpu_custom_call.1} parent=1 // pred_fallthru
      _
    // Predicated region
    $region18: #{tpu_custom_call.1} parent=1 // pred_check
      _
    $region19: #{tpu_custom_call.1} parent=1 // pred_check_branch
      %68 = sbr.rel (0) target = $region21
    $region20: #{tpu_custom_call.1} parent=1 // pred_region
      _
    $region21: #{tpu_custom_call.1} parent=1 // pred_fallthru
      _
    // Predicated region
    $region22: #{tpu_custom_call.1} parent=1 // pred_check
      _
    $region23: #{tpu_custom_call.1} parent=1 // pred_check_branch
      %70 = sbr.rel (0) target = $region25
    $region24: #{tpu_custom_call.1} parent=1 // pred_region
      %72 = vsyncadd [#allocation9], 0
      %s73 = sshll.u32 %s5, 4
      %s74 = int_to_ptr.hbm [resolvable:$true] %s73
      %s75 = sshll.u32 [#allocation10], 4
      %s76 = int_to_ptr.vmem [resolvable:$true] %s75
      %81 = dma.hbm_to_vmem [thread:$0]  %s74, 4096, %s76, [#allocation9], 128, 128, 8
    $region25: #{tpu_custom_call.1} parent=1 // pred_fallthru
      _
    // Predicated region
    $region26: #{tpu_custom_call.1} parent=1 // pred_check
      _
    $region27: #{tpu_custom_call.1} parent=1 // pred_check_branch
      %83 = sbr.rel (0) target = $region29
    $region28: #{tpu_custom_call.1} parent=1 // pred_region
      _
    $region29: #{tpu_custom_call.1} parent=1 // pred_fallthru
      _
    // Predicated region
    $region30: #{tpu_custom_call.1} parent=1 // pred_check
      _
    $region31: #{tpu_custom_call.1} parent=1 // pred_check_branch
      %85 = sbr.rel (0) target = $region33
    $region32: #{tpu_custom_call.1} parent=1 // pred_region
      %87 = vsyncadd [#allocation12], 0
      %s88 = sshll.u32 %s7, 4
      %s89 = int_to_ptr.hbm [resolvable:$true] %s88
      %s90 = sshll.u32 [#allocation11], 4
      %s91 = int_to_ptr.vmem [resolvable:$true] %s90
      %96 = dma.hbm_to_vmem [thread:$0]  %s89, 2048, %s91, [#allocation12], 64, 64, 4
    $region33: #{tpu_custom_call.1} parent=1 // pred_fallthru
      _
    // Predicated region
    $region34: #{tpu_custom_call.1} parent=1 // pred_check
      _
    $region35: #{tpu_custom_call.1} parent=1 // pred_check_branch
      %98 = sbr.rel (0) target = $region37
    $region36: #{tpu_custom_call.1} parent=1 // pred_region
      _
    $region37: #{tpu_custom_call.1} parent=1 // pred_fallthru
      _
    // Predicated region
    $region38: #{tpu_custom_call.1} parent=1 // pred_check
      _
    $region39: #{tpu_custom_call.1} parent=1 // pred_check_branch
      %100 = sbr.rel (0) target = $region41
    $region40: #{tpu_custom_call.1} parent=1 // pred_region
      %102 = dma.done [#allocation3], 128
    $region41: #{tpu_custom_call.1} parent=1 // pred_fallthru
      _
    // Predicated region
    $region42: #{tpu_custom_call.1} parent=1 // pred_check
      _
    $region43: #{tpu_custom_call.1} parent=1 // pred_check_branch
      %104 = sbr.rel (0) target = $region45
    $region44: #{tpu_custom_call.1} parent=1 // pred_region
      %106 = dma.done [#allocation6], 4096
    $region45: #{tpu_custom_call.1} parent=1 // pred_fallthru
      _
    // Predicated region
    $region46: #{tpu_custom_call.1} parent=1 // pred_check
      _
    $region47: #{tpu_custom_call.1} parent=1 // pred_check_branch
      %108 = sbr.rel (0) target = $region49
    $region48: #{tpu_custom_call.1} parent=1 // pred_region
      %110 = dma.done [#allocation6], 64
    $region49: #{tpu_custom_call.1} parent=1 // pred_fallthru
      _
    // Predicated region
    $region50: #{tpu_custom_call.1} parent=1 // pred_check
      _
    $region51: #{tpu_custom_call.1} parent=1 // pred_check_branch
      %112 = sbr.rel (0) target = $region53
    $region52: #{tpu_custom_call.1} parent=1 // pred_region
      %114 = dma.done [#allocation9], 8192
    $region53: #{tpu_custom_call.1} parent=1 // pred_fallthru
      _
    // Predicated region
    $region54: #{tpu_custom_call.1} parent=1 // pred_check
      _
    $region55: #{tpu_custom_call.1} parent=1 // pred_check_branch
      %116 = sbr.rel (0) target = $region57
    $region56: #{tpu_custom_call.1} parent=1 // pred_region
      %118 = dma.done [#allocation9], 4096
    $region57: #{tpu_custom_call.1} parent=1 // pred_fallthru
      _
    // Predicated region
    $region58: #{tpu_custom_call.1} parent=1 // pred_check
      _
    $region59: #{tpu_custom_call.1} parent=1 // pred_check_branch
      %120 = sbr.rel (0) target = $region61
    $region60: #{tpu_custom_call.1} parent=1 // pred_region
      %122 = dma.done [#allocation12], 2048
    $region61: #{tpu_custom_call.1} parent=1 // pred_fallthru
      _
    %v123 = vld [vmem:[#allocation2] sm:$0xff]
    %v124 = vpack.c.bf16 %v123, %v123
    %v125 = vld [vmem:[#allocation5] sm:$0xff]
    %v126 = vld [vmem:[#allocation5 + $0x8] sm:$0xff]
    %v127 = vld [vmem:[#allocation5 + $0x10] sm:$0xff]
    %v128 = vld [vmem:[#allocation5 + $0x18] sm:$0xff]
    %v129 = vld [vmem:[#allocation5 + $0x20] sm:$0xff]
    %v130 = vld [vmem:[#allocation5 + $0x28] sm:$0xff]
    %v131 = vld [vmem:[#allocation5 + $0x30] sm:$0xff]
    %v132 = vld [vmem:[#allocation5 + $0x38] sm:$0xff]
    %v133 = vld [vmem:[#allocation5 + $0x40] sm:$0xff]
    %v134 = vld [vmem:[#allocation5 + $0x48] sm:$0xff]
    %v135 = vld [vmem:[#allocation5 + $0x50] sm:$0xff]
    %v136 = vld [vmem:[#allocation5 + $0x58] sm:$0xff]
    %v137 = vld [vmem:[#allocation5 + $0x60] sm:$0xff]
    %v138 = vld [vmem:[#allocation5 + $0x68] sm:$0xff]
    %v139 = vld [vmem:[#allocation5 + $0x70] sm:$0xff]
    %v140 = vld [vmem:[#allocation5 + $0x78] sm:$0xff]
    %v141 = vld [vmem:[#allocation5 + $0x80] sm:$0xff]
    %v142 = vld [vmem:[#allocation5 + $0x88] sm:$0xff]
    %v143 = vld [vmem:[#allocation5 + $0x90] sm:$0xff]
    %v144 = vld [vmem:[#allocation5 + $0x98] sm:$0xff]
    %v145 = vld [vmem:[#allocation5 + $0xa0] sm:$0xff]
    %v146 = vld [vmem:[#allocation5 + $0xa8] sm:$0xff]
    %v147 = vld [vmem:[#allocation5 + $0xb0] sm:$0xff]
    %v148 = vld [vmem:[#allocation5 + $0xb8] sm:$0xff]
    %v149 = vld [vmem:[#allocation5 + $0xc0] sm:$0xff]
    %v150 = vld [vmem:[#allocation5 + $0xc8] sm:$0xff]
    %v151 = vld [vmem:[#allocation5 + $0xd0] sm:$0xff]
    %v152 = vld [vmem:[#allocation5 + $0xd8] sm:$0xff]
    %v153 = vld [vmem:[#allocation5 + $0xe0] sm:$0xff]
    %v154 = vld [vmem:[#allocation5 + $0xe8] sm:$0xff]
    %v155 = vld [vmem:[#allocation5 + $0xf0] sm:$0xff]
    %v156 = vld [vmem:[#allocation5 + $0xf8] sm:$0xff]
    %v157 = vld [vmem:[#allocation7] sm:$0xf]
    %v159 = vperm.slane %v157, 0
    %v160 = vperm.slane %v157, 1
    %v161 = vperm.slane %v157, 2
    %v162 = vperm.slane %v157, 3
    %v199 = vunpack.c.l.b16 %v125
    %v200 = vunpack.c.h.b16 %v125
    %v201 = vunpack.c.l.b16 %v126
    %v202 = vunpack.c.h.b16 %v126
    %v203 = vunpack.c.l.b16 %v127
    %v204 = vunpack.c.h.b16 %v127
    %v205 = vunpack.c.l.b16 %v128
    %v206 = vunpack.c.h.b16 %v128
    %v207 = vunpack.c.l.b16 %v129
    %v208 = vunpack.c.h.b16 %v129
    %v209 = vunpack.c.l.b16 %v130
    %v210 = vunpack.c.h.b16 %v130
    %v211 = vunpack.c.l.b16 %v131
    %v212 = vunpack.c.h.b16 %v131
    %v213 = vunpack.c.l.b16 %v132
    %v214 = vunpack.c.h.b16 %v132
    %v215 = vunpack.c.l.b16 %v133
    %v216 = vunpack.c.h.b16 %v133
    %v217 = vunpack.c.l.b16 %v134
    %v218 = vunpack.c.h.b16 %v134
    %v219 = vunpack.c.l.b16 %v135
    %v220 = vunpack.c.h.b16 %v135
    %v221 = vunpack.c.l.b16 %v136
    %v222 = vunpack.c.h.b16 %v136
    %v223 = vunpack.c.l.b16 %v137
    %v224 = vunpack.c.h.b16 %v137
    %v225 = vunpack.c.l.b16 %v138
    %v226 = vunpack.c.h.b16 %v138
    %v227 = vunpack.c.l.b16 %v139
    %v228 = vunpack.c.h.b16 %v139
    %v229 = vunpack.c.l.b16 %v140
    %v230 = vunpack.c.h.b16 %v140
    %v231 = vunpack.c.l.b16 %v141
    %v232 = vunpack.c.h.b16 %v141
    %v233 = vunpack.c.l.b16 %v142
    %v234 = vunpack.c.h.b16 %v142
    %v235 = vunpack.c.l.b16 %v143
    %v236 = vunpack.c.h.b16 %v143
    %v237 = vunpack.c.l.b16 %v144
    %v238 = vunpack.c.h.b16 %v144
    %v239 = vunpack.c.l.b16 %v145
    %v240 = vunpack.c.h.b16 %v145
    %v241 = vunpack.c.l.b16 %v146
    %v242 = vunpack.c.h.b16 %v146
    %v243 = vunpack.c.l.b16 %v147
    %v244 = vunpack.c.h.b16 %v147
    %v245 = vunpack.c.l.b16 %v148
    %v246 = vunpack.c.h.b16 %v148
    %v247 = vunpack.c.l.b16 %v149
    %v248 = vunpack.c.h.b16 %v149
    %v249 = vunpack.c.l.b16 %v150
    %v250 = vunpack.c.h.b16 %v150
    %v251 = vunpack.c.l.b16 %v151
    %v252 = vunpack.c.h.b16 %v151
    %v253 = vunpack.c.l.b16 %v152
    %v254 = vunpack.c.h.b16 %v152
    %v255 = vunpack.c.l.b16 %v153
    %v256 = vunpack.c.h.b16 %v153
    %v257 = vunpack.c.l.b16 %v154
    %v258 = vunpack.c.h.b16 %v154
    %v259 = vunpack.c.l.b16 %v155
    %v260 = vunpack.c.h.b16 %v155
    %v261 = vunpack.c.l.b16 %v156
    %v262 = vunpack.c.h.b16 %v156
    %v263 = vpack.c.b16 %v203, %v199
    %v264 = vpack.c.b16 %v204, %v200
    %v265 = vpack.c.b16 %v205, %v201
    %v266 = vpack.c.b16 %v206, %v202
    %v267 = vpack.c.b16 %v211, %v207
    %v268 = vpack.c.b16 %v212, %v208
    %v269 = vpack.c.b16 %v213, %v209
    %v270 = vpack.c.b16 %v214, %v210
    %v271 = vpack.c.b16 %v219, %v215
    %v272 = vpack.c.b16 %v220, %v216
    %v273 = vpack.c.b16 %v221, %v217
    %v274 = vpack.c.b16 %v222, %v218
    %v275 = vpack.c.b16 %v227, %v223
    %v276 = vpack.c.b16 %v228, %v224
    %v277 = vpack.c.b16 %v229, %v225
    %v278 = vpack.c.b16 %v230, %v226
    %v279 = vpack.c.b16 %v235, %v231
    %v280 = vpack.c.b16 %v236, %v232
    %v281 = vpack.c.b16 %v237, %v233
    %v282 = vpack.c.b16 %v238, %v234
    %v283 = vpack.c.b16 %v243, %v239
    %v284 = vpack.c.b16 %v244, %v240
    %v285 = vpack.c.b16 %v245, %v241
    %v286 = vpack.c.b16 %v246, %v242
    %v287 = vpack.c.b16 %v251, %v247
    %v288 = vpack.c.b16 %v252, %v248
    %v289 = vpack.c.b16 %v253, %v249
    %v290 = vpack.c.b16 %v254, %v250
    %v291 = vpack.c.b16 %v259, %v255
    %v292 = vpack.c.b16 %v260, %v256
    %v293 = vpack.c.b16 %v261, %v257
    %v294 = vpack.c.b16 %v262, %v258
    %327 = vmatpush.bf16.msra.mxu0 %v291
    %328 = vmatpush.bf16.msra.mxu0 %v287
    %329 = vmatpush.bf16.msra.mxu0 %v283
    %330 = vmatpush.bf16.msra.mxu0 %v279
    %331 = vmatpush.bf16.msra.mxu0 %v275
    %332 = vmatpush.bf16.msra.mxu0 %v271
    %333 = vmatpush.bf16.msra.mxu0 %v267
    %334 = vmatpush.bf16.msra.mxu0 %v263
    %335 = vmatmul.bf16.gmra.mxu0 %v124
    %v336 = vpop.f32.mrf.mxu0
    %v337 = vadd.f32 %v159, %v336
    %v338 = vpop.f32.mrf.mxu0
    %339 = vdwg.mxu0
    %340 = vmatpush.bf16.msra.mxu0 %v292
    %341 = vmatpush.bf16.msra.mxu0 %v288
    %342 = vmatpush.bf16.msra.mxu0 %v284
    %343 = vmatpush.bf16.msra.mxu0 %v280
    %344 = vmatpush.bf16.msra.mxu0 %v276
    %345 = vmatpush.bf16.msra.mxu0 %v272
    %346 = vmatpush.bf16.msra.mxu0 %v268
    %347 = vmatpush.bf16.msra.mxu0 %v264
    %348 = vmatmul.bf16.gmra.mxu0 %v124
    %v349 = vpop.f32.mrf.mxu0
    %v350 = vadd.f32 %v160, %v349
    %v351 = vpop.f32.mrf.mxu0
    %352 = vdwg.mxu0
    %353 = vmatpush.bf16.msra.mxu0 %v293
    %354 = vmatpush.bf16.msra.mxu0 %v289
    %355 = vmatpush.bf16.msra.mxu0 %v285
    %356 = vmatpush.bf16.msra.mxu0 %v281
    %357 = vmatpush.bf16.msra.mxu0 %v277
    %358 = vmatpush.bf16.msra.mxu0 %v273
    %359 = vmatpush.bf16.msra.mxu0 %v269
    %360 = vmatpush.bf16.msra.mxu0 %v265
    %361 = vmatmul.bf16.gmra.mxu0 %v124
    %v362 = vpop.f32.mrf.mxu0
    %v363 = vadd.f32 %v161, %v362
    %v364 = vpop.f32.mrf.mxu0
    %365 = vdwg.mxu0
    %366 = vmatpush.bf16.msra.mxu0 %v294
    %367 = vmatpush.bf16.msra.mxu0 %v290
    %368 = vmatpush.bf16.msra.mxu0 %v286
    %369 = vmatpush.bf16.msra.mxu0 %v282
    %370 = vmatpush.bf16.msra.mxu0 %v278
    %371 = vmatpush.bf16.msra.mxu0 %v274
    %372 = vmatpush.bf16.msra.mxu0 %v270
    %373 = vmatpush.bf16.msra.mxu0 %v266
    %374 = vmatmul.bf16.gmra.mxu0 %v124
    %v375 = vpop.f32.mrf.mxu0
    %v376 = vadd.f32 %v162, %v375
    %v377 = vpop.f32.mrf.mxu0
    %378 = vdwg.mxu0
    %v379 = vmax.f32 %v337, 0.0
    %v380 = vmax.f32 %v350, 0.0
    %v381 = vmax.f32 %v363, 0.0
    %v382 = vmax.f32 %v376, 0.0
    %v383 = vpack.c.bf16 %v379, %v379
    %v384 = vpack.c.bf16 %v380, %v380
    %v385 = vpack.c.bf16 %v381, %v381
    %v386 = vpack.c.bf16 %v382, %v382
    %v387 = vld [vmem:[#allocation8] sm:$0xff]
    %v388 = vld [vmem:[#allocation8 + $0x8] sm:$0xff]
    %v389 = vld [vmem:[#allocation8 + $0x10] sm:$0xff]
    %v390 = vld [vmem:[#allocation8 + $0x18] sm:$0xff]
    %v391 = vld [vmem:[#allocation8 + $0x20] sm:$0xff]
    %v392 = vld [vmem:[#allocation8 + $0x28] sm:$0xff]
    %v393 = vld [vmem:[#allocation8 + $0x30] sm:$0xff]
    %v394 = vld [vmem:[#allocation8 + $0x38] sm:$0xff]
    %v395 = vld [vmem:[#allocation8 + $0x40] sm:$0xff]
    %v396 = vld [vmem:[#allocation8 + $0x48] sm:$0xff]
    %v397 = vld [vmem:[#allocation8 + $0x50] sm:$0xff]
    %v398 = vld [vmem:[#allocation8 + $0x58] sm:$0xff]
    %v399 = vld [vmem:[#allocation8 + $0x60] sm:$0xff]
    %v400 = vld [vmem:[#allocation8 + $0x68] sm:$0xff]
    %v401 = vld [vmem:[#allocation8 + $0x70] sm:$0xff]
    %v402 = vld [vmem:[#allocation8 + $0x78] sm:$0xff]
    %v403 = vld [vmem:[#allocation8 + $0x80] sm:$0xff]
    %v404 = vld [vmem:[#allocation8 + $0x88] sm:$0xff]
    %v405 = vld [vmem:[#allocation8 + $0x90] sm:$0xff]
    %v406 = vld [vmem:[#allocation8 + $0x98] sm:$0xff]
    %v407 = vld [vmem:[#allocation8 + $0xa0] sm:$0xff]
    %v408 = vld [vmem:[#allocation8 + $0xa8] sm:$0xff]
    %v409 = vld [vmem:[#allocation8 + $0xb0] sm:$0xff]
    %v410 = vld [vmem:[#allocation8 + $0xb8] sm:$0xff]
    %v411 = vld [vmem:[#allocation8 + $0xc0] sm:$0xff]
    %v412 = vld [vmem:[#allocation8 + $0xc8] sm:$0xff]
    %v413 = vld [vmem:[#allocation8 + $0xd0] sm:$0xff]
    %v414 = vld [vmem:[#allocation8 + $0xd8] sm:$0xff]
    %v415 = vld [vmem:[#allocation8 + $0xe0] sm:$0xff]
    %v416 = vld [vmem:[#allocation8 + $0xe8] sm:$0xff]
    %v417 = vld [vmem:[#allocation8 + $0xf0] sm:$0xff]
    %v418 = vld [vmem:[#allocation8 + $0xf8] sm:$0xff]
    %v419 = vld [vmem:[#allocation8 + $0x100] sm:$0xff]
    %v420 = vld [vmem:[#allocation8 + $0x108] sm:$0xff]
    %v421 = vld [vmem:[#allocation8 + $0x110] sm:$0xff]
    %v422 = vld [vmem:[#allocation8 + $0x118] sm:$0xff]
    %v423 = vld [vmem:[#allocation8 + $0x120] sm:$0xff]
    %v424 = vld [vmem:[#allocation8 + $0x128] sm:$0xff]
    %v425 = vld [vmem:[#allocation8 + $0x130] sm:$0xff]
    %v426 = vld [vmem:[#allocation8 + $0x138] sm:$0xff]
    %v427 = vld [vmem:[#allocation8 + $0x140] sm:$0xff]
    %v428 = vld [vmem:[#allocation8 + $0x148] sm:$0xff]
    %v429 = vld [vmem:[#allocation8 + $0x150] sm:$0xff]
    %v430 = vld [vmem:[#allocation8 + $0x158] sm:$0xff]
    %v431 = vld [vmem:[#allocation8 + $0x160] sm:$0xff]
    %v432 = vld [vmem:[#allocation8 + $0x168] sm:$0xff]
    %v433 = vld [vmem:[#allocation8 + $0x170] sm:$0xff]
    %v434 = vld [vmem:[#allocation8 + $0x178] sm:$0xff]
    %v435 = vld [vmem:[#allocation8 + $0x180] sm:$0xff]
    %v436 = vld [vmem:[#allocation8 + $0x188] sm:$0xff]
    %v437 = vld [vmem:[#allocation8 + $0x190] sm:$0xff]
    %v438 = vld [vmem:[#allocation8 + $0x198] sm:$0xff]
    %v439 = vld [vmem:[#allocation8 + $0x1a0] sm:$0xff]
    %v440 = vld [vmem:[#allocation8 + $0x1a8] sm:$0xff]
    %v441 = vld [vmem:[#allocation8 + $0x1b0] sm:$0xff]
    %v442 = vld [vmem:[#allocation8 + $0x1b8] sm:$0xff]
    %v443 = vld [vmem:[#allocation8 + $0x1c0] sm:$0xff]
    %v444 = vld [vmem:[#allocation8 + $0x1c8] sm:$0xff]
    %v445 = vld [vmem:[#allocation8 + $0x1d0] sm:$0xff]
    %v446 = vld [vmem:[#allocation8 + $0x1d8] sm:$0xff]
    %v447 = vld [vmem:[#allocation8 + $0x1e0] sm:$0xff]
    %v448 = vld [vmem:[#allocation8 + $0x1e8] sm:$0xff]
    %v449 = vld [vmem:[#allocation8 + $0x1f0] sm:$0xff]
    %v450 = vld [vmem:[#allocation8 + $0x1f8] sm:$0xff]
    %v451 = vld [vmem:[%s4] sm:$0x3]
    %v453 = vperm.slane %v451, 0
    %v454 = vperm.slane %v451, 1
    %v521 = vunpack.c.l.b16 %v387
    %v522 = vunpack.c.h.b16 %v387
    %v523 = vunpack.c.l.b16 %v388
    %v524 = vunpack.c.h.b16 %v388
    %v525 = vunpack.c.l.b16 %v389
    %v526 = vunpack.c.h.b16 %v389
    %v527 = vunpack.c.l.b16 %v390
    %v528 = vunpack.c.h.b16 %v390
    %v529 = vunpack.c.l.b16 %v391
    %v530 = vunpack.c.h.b16 %v391
    %v531 = vunpack.c.l.b16 %v392
    %v532 = vunpack.c.h.b16 %v392
    %v533 = vunpack.c.l.b16 %v393
    %v534 = vunpack.c.h.b16 %v393
    %v535 = vunpack.c.l.b16 %v394
    %v536 = vunpack.c.h.b16 %v394
    %v537 = vunpack.c.l.b16 %v395
    %v538 = vunpack.c.h.b16 %v395
    %v539 = vunpack.c.l.b16 %v396
    %v540 = vunpack.c.h.b16 %v396
    %v541 = vunpack.c.l.b16 %v397
    %v542 = vunpack.c.h.b16 %v397
    %v543 = vunpack.c.l.b16 %v398
    %v544 = vunpack.c.h.b16 %v398
    %v545 = vunpack.c.l.b16 %v399
    %v546 = vunpack.c.h.b16 %v399
    %v547 = vunpack.c.l.b16 %v400
    %v548 = vunpack.c.h.b16 %v400
    %v549 = vunpack.c.l.b16 %v401
    %v550 = vunpack.c.h.b16 %v401
    %v551 = vunpack.c.l.b16 %v402
    %v552 = vunpack.c.h.b16 %v402
    %v553 = vunpack.c.l.b16 %v403
    %v554 = vunpack.c.h.b16 %v403
    %v555 = vunpack.c.l.b16 %v404
    %v556 = vunpack.c.h.b16 %v404
    %v557 = vunpack.c.l.b16 %v405
    %v558 = vunpack.c.h.b16 %v405
    %v559 = vunpack.c.l.b16 %v406
    %v560 = vunpack.c.h.b16 %v406
    %v561 = vunpack.c.l.b16 %v407
    %v562 = vunpack.c.h.b16 %v407
    %v563 = vunpack.c.l.b16 %v408
    %v564 = vunpack.c.h.b16 %v408
    %v565 = vunpack.c.l.b16 %v409
    %v566 = vunpack.c.h.b16 %v409
    %v567 = vunpack.c.l.b16 %v410
    %v568 = vunpack.c.h.b16 %v410
    %v569 = vunpack.c.l.b16 %v411
    %v570 = vunpack.c.h.b16 %v411
    %v571 = vunpack.c.l.b16 %v412
    %v572 = vunpack.c.h.b16 %v412
    %v573 = vunpack.c.l.b16 %v413
    %v574 = vunpack.c.h.b16 %v413
    %v575 = vunpack.c.l.b16 %v414
    %v576 = vunpack.c.h.b16 %v414
    %v577 = vunpack.c.l.b16 %v415
    %v578 = vunpack.c.h.b16 %v415
    %v579 = vunpack.c.l.b16 %v416
    %v580 = vunpack.c.h.b16 %v416
    %v581 = vunpack.c.l.b16 %v417
    %v582 = vunpack.c.h.b16 %v417
    %v583 = vunpack.c.l.b16 %v418
    %v584 = vunpack.c.h.b16 %v418
    %v585 = vunpack.c.l.b16 %v419
    %v586 = vunpack.c.h.b16 %v419
    %v587 = vunpack.c.l.b16 %v420
    %v588 = vunpack.c.h.b16 %v420
    %v589 = vunpack.c.l.b16 %v421
    %v590 = vunpack.c.h.b16 %v421
    %v591 = vunpack.c.l.b16 %v422
    %v592 = vunpack.c.h.b16 %v422
    %v593 = vunpack.c.l.b16 %v423
    %v594 = vunpack.c.h.b16 %v423
    %v595 = vunpack.c.l.b16 %v424
    %v596 = vunpack.c.h.b16 %v424
    %v597 = vunpack.c.l.b16 %v425
    %v598 = vunpack.c.h.b16 %v425
    %v599 = vunpack.c.l.b16 %v426
    %v600 = vunpack.c.h.b16 %v426
    %v601 = vunpack.c.l.b16 %v427
    %v602 = vunpack.c.h.b16 %v427
    %v603 = vunpack.c.l.b16 %v428
    %v604 = vunpack.c.h.b16 %v428
    %v605 = vunpack.c.l.b16 %v429
    %v606 = vunpack.c.h.b16 %v429
    %v607 = vunpack.c.l.b16 %v430
    %v608 = vunpack.c.h.b16 %v430
    %v609 = vunpack.c.l.b16 %v431
    %v610 = vunpack.c.h.b16 %v431
    %v611 = vunpack.c.l.b16 %v432
    %v612 = vunpack.c.h.b16 %v432
    %v613 = vunpack.c.l.b16 %v433
    %v614 = vunpack.c.h.b16 %v433
    %v615 = vunpack.c.l.b16 %v434
    %v616 = vunpack.c.h.b16 %v434
    %v617 = vunpack.c.l.b16 %v435
    %v618 = vunpack.c.h.b16 %v435
    %v619 = vunpack.c.l.b16 %v436
    %v620 = vunpack.c.h.b16 %v436
    %v621 = vunpack.c.l.b16 %v437
    %v622 = vunpack.c.h.b16 %v437
    %v623 = vunpack.c.l.b16 %v438
    %v624 = vunpack.c.h.b16 %v438
    %v625 = vunpack.c.l.b16 %v439
    %v626 = vunpack.c.h.b16 %v439
    %v627 = vunpack.c.l.b16 %v440
    %v628 = vunpack.c.h.b16 %v440
    %v629 = vunpack.c.l.b16 %v441
    %v630 = vunpack.c.h.b16 %v441
    %v631 = vunpack.c.l.b16 %v442
    %v632 = vunpack.c.h.b16 %v442
    %v633 = vunpack.c.l.b16 %v443
    %v634 = vunpack.c.h.b16 %v443
    %v635 = vunpack.c.l.b16 %v444
    %v636 = vunpack.c.h.b16 %v444
    %v637 = vunpack.c.l.b16 %v445
    %v638 = vunpack.c.h.b16 %v445
    %v639 = vunpack.c.l.b16 %v446
    %v640 = vunpack.c.h.b16 %v446
    %v641 = vunpack.c.l.b16 %v447
    %v642 = vunpack.c.h.b16 %v447
    %v643 = vunpack.c.l.b16 %v448
    %v644 = vunpack.c.h.b16 %v448
    %v645 = vunpack.c.l.b16 %v449
    %v646 = vunpack.c.h.b16 %v449
    %v647 = vunpack.c.l.b16 %v450
    %v648 = vunpack.c.h.b16 %v450
    %v649 = vpack.c.b16 %v523, %v521
    %v650 = vpack.c.b16 %v524, %v522
    %v651 = vpack.c.b16 %v527, %v525
    %v652 = vpack.c.b16 %v528, %v526
    %v653 = vpack.c.b16 %v531, %v529
    %v654 = vpack.c.b16 %v532, %v530
    %v655 = vpack.c.b16 %v535, %v533
    %v656 = vpack.c.b16 %v536, %v534
    %v657 = vpack.c.b16 %v539, %v537
    %v658 = vpack.c.b16 %v540, %v538
    %v659 = vpack.c.b16 %v543, %v541
    %v660 = vpack.c.b16 %v544, %v542
    %v661 = vpack.c.b16 %v547, %v545
    %v662 = vpack.c.b16 %v548, %v546
    %v663 = vpack.c.b16 %v551, %v549
    %v664 = vpack.c.b16 %v552, %v550
    %v665 = vpack.c.b16 %v555, %v553
    %v666 = vpack.c.b16 %v556, %v554
    %v667 = vpack.c.b16 %v559, %v557
    %v668 = vpack.c.b16 %v560, %v558
    %v669 = vpack.c.b16 %v563, %v561
    %v670 = vpack.c.b16 %v564, %v562
    %v671 = vpack.c.b16 %v567, %v565
    %v672 = vpack.c.b16 %v568, %v566
    %v673 = vpack.c.b16 %v571, %v569
    %v674 = vpack.c.b16 %v572, %v570
    %v675 = vpack.c.b16 %v575, %v573
    %v676 = vpack.c.b16 %v576, %v574
    %v677 = vpack.c.b16 %v579, %v577
    %v678 = vpack.c.b16 %v580, %v578
    %v679 = vpack.c.b16 %v583, %v581
    %v680 = vpack.c.b16 %v584, %v582
    %v681 = vpack.c.b16 %v587, %v585
    %v682 = vpack.c.b16 %v588, %v586
    %v683 = vpack.c.b16 %v591, %v589
    %v684 = vpack.c.b16 %v592, %v590
    %v685 = vpack.c.b16 %v595, %v593
    %v686 = vpack.c.b16 %v596, %v594
    %v687 = vpack.c.b16 %v599, %v597
    %v688 = vpack.c.b16 %v600, %v598
    %v689 = vpack.c.b16 %v603, %v601
    %v690 = vpack.c.b16 %v604, %v602
    %v691 = vpack.c.b16 %v607, %v605
    %v692 = vpack.c.b16 %v608, %v606
    %v693 = vpack.c.b16 %v611, %v609
    %v694 = vpack.c.b16 %v612, %v610
    %v695 = vpack.c.b16 %v615, %v613
    %v696 = vpack.c.b16 %v616, %v614
    %v697 = vpack.c.b16 %v619, %v617
    %v698 = vpack.c.b16 %v620, %v618
    %v699 = vpack.c.b16 %v623, %v621
    %v700 = vpack.c.b16 %v624, %v622
    %v701 = vpack.c.b16 %v627, %v625
    %v702 = vpack.c.b16 %v628, %v626
    %v703 = vpack.c.b16 %v631, %v629
    %v704 = vpack.c.b16 %v632, %v630
    %v705 = vpack.c.b16 %v635, %v633
    %v706 = vpack.c.b16 %v636, %v634
    %v707 = vpack.c.b16 %v639, %v637
    %v708 = vpack.c.b16 %v640, %v638
    %v709 = vpack.c.b16 %v643, %v641
    %v710 = vpack.c.b16 %v644, %v642
    %v711 = vpack.c.b16 %v647, %v645
    %v712 = vpack.c.b16 %v648, %v646
    %777 = vmatpush.bf16.msra.mxu0 %v663
    %778 = vmatpush.bf16.msra.mxu0 %v661
    %779 = vmatpush.bf16.msra.mxu0 %v659
    %780 = vmatpush.bf16.msra.mxu0 %v657
    %781 = vmatpush.bf16.msra.mxu0 %v655
    %782 = vmatpush.bf16.msra.mxu0 %v653
    %783 = vmatpush.bf16.msra.mxu0 %v651
    %784 = vmatpush.bf16.msra.mxu0 %v649
    %785 = vmatmul.bf16.gmra.mxu0 %v383
    %v786 = vpop.f32.mrf.mxu0
    %v787 = vadd.f32 %v453, %v786
    %v788 = vpop.f32.mrf.mxu0
    %789 = vdwg.mxu0
    %790 = vmatpush.bf16.msra.mxu0 %v679
    %791 = vmatpush.bf16.msra.mxu0 %v677
    %792 = vmatpush.bf16.msra.mxu0 %v675
    %793 = vmatpush.bf16.msra.mxu0 %v673
    %794 = vmatpush.bf16.msra.mxu0 %v671
    %795 = vmatpush.bf16.msra.mxu0 %v669
    %796 = vmatpush.bf16.msra.mxu0 %v667
    %797 = vmatpush.bf16.msra.mxu0 %v665
    %798 = vmatmul.bf16.gmra.mxu0 %v384
    %v799 = vpop.f32.mrf.mxu0
    %v800 = vadd.f32 %v787, %v799
    %v801 = vpop.f32.mrf.mxu0
    %802 = vdwg.mxu0
    %803 = vmatpush.bf16.msra.mxu0 %v695
    %804 = vmatpush.bf16.msra.mxu0 %v693
    %805 = vmatpush.bf16.msra.mxu0 %v691
    %806 = vmatpush.bf16.msra.mxu0 %v689
    %807 = vmatpush.bf16.msra.mxu0 %v687
    %808 = vmatpush.bf16.msra.mxu0 %v685
    %809 = vmatpush.bf16.msra.mxu0 %v683
    %810 = vmatpush.bf16.msra.mxu0 %v681
    %811 = vmatmul.bf16.gmra.mxu0 %v385
    %v812 = vpop.f32.mrf.mxu0
    %v813 = vadd.f32 %v800, %v812
    %v814 = vpop.f32.mrf.mxu0
    %815 = vdwg.mxu0
    %816 = vmatpush.bf16.msra.mxu0 %v711
    %817 = vmatpush.bf16.msra.mxu0 %v709
    %818 = vmatpush.bf16.msra.mxu0 %v707
    %819 = vmatpush.bf16.msra.mxu0 %v705
    %820 = vmatpush.bf16.msra.mxu0 %v703
    %821 = vmatpush.bf16.msra.mxu0 %v701
    %822 = vmatpush.bf16.msra.mxu0 %v699
    %823 = vmatpush.bf16.msra.mxu0 %v697
    %824 = vmatmul.bf16.gmra.mxu0 %v386
    %v825 = vpop.f32.mrf.mxu0
    %v826 = vadd.f32 %v813, %v825
    %v827 = vpop.f32.mrf.mxu0
    %828 = vdwg.mxu0
    %829 = vmatpush.bf16.msra.mxu0 %v664
    %830 = vmatpush.bf16.msra.mxu0 %v662
    %831 = vmatpush.bf16.msra.mxu0 %v660
    %832 = vmatpush.bf16.msra.mxu0 %v658
    %833 = vmatpush.bf16.msra.mxu0 %v656
    %834 = vmatpush.bf16.msra.mxu0 %v654
    %835 = vmatpush.bf16.msra.mxu0 %v652
    %836 = vmatpush.bf16.msra.mxu0 %v650
    %837 = vmatmul.bf16.gmra.mxu0 %v383
    %v838 = vpop.f32.mrf.mxu0
    %v839 = vadd.f32 %v454, %v838
    %v840 = vpop.f32.mrf.mxu0
    %841 = vdwg.mxu0
    %842 = vmatpush.bf16.msra.mxu0 %v680
    %843 = vmatpush.bf16.msra.mxu0 %v678
    %844 = vmatpush.bf16.msra.mxu0 %v676
    %845 = vmatpush.bf16.msra.mxu0 %v674
    %846 = vmatpush.bf16.msra.mxu0 %v672
    %847 = vmatpush.bf16.msra.mxu0 %v670
    %848 = vmatpush.bf16.msra.mxu0 %v668
    %849 = vmatpush.bf16.msra.mxu0 %v666
    %850 = vmatmul.bf16.gmra.mxu0 %v384
    %v851 = vpop.f32.mrf.mxu0
    %v852 = vadd.f32 %v839, %v851
    %v853 = vpop.f32.mrf.mxu0
    %854 = vdwg.mxu0
    %855 = vmatpush.bf16.msra.mxu0 %v696
    %856 = vmatpush.bf16.msra.mxu0 %v694
    %857 = vmatpush.bf16.msra.mxu0 %v692
    %858 = vmatpush.bf16.msra.mxu0 %v690
    %859 = vmatpush.bf16.msra.mxu0 %v688
    %860 = vmatpush.bf16.msra.mxu0 %v686
    %861 = vmatpush.bf16.msra.mxu0 %v684
    %862 = vmatpush.bf16.msra.mxu0 %v682
    %863 = vmatmul.bf16.gmra.mxu0 %v385
    %v864 = vpop.f32.mrf.mxu0
    %v865 = vadd.f32 %v852, %v864
    %v866 = vpop.f32.mrf.mxu0
    %867 = vdwg.mxu0
    %868 = vmatpush.bf16.msra.mxu0 %v712
    %869 = vmatpush.bf16.msra.mxu0 %v710
    %870 = vmatpush.bf16.msra.mxu0 %v708
    %871 = vmatpush.bf16.msra.mxu0 %v706
    %872 = vmatpush.bf16.msra.mxu0 %v704
    %873 = vmatpush.bf16.msra.mxu0 %v702
    %874 = vmatpush.bf16.msra.mxu0 %v700
    %875 = vmatpush.bf16.msra.mxu0 %v698
    %876 = vmatmul.bf16.gmra.mxu0 %v386
    %v877 = vpop.f32.mrf.mxu0
    %v878 = vadd.f32 %v865, %v877
    %v879 = vpop.f32.mrf.mxu0
    %880 = vdwg.mxu0
    %v881 = vmax.f32 %v826, 0.0
    %v882 = vmax.f32 %v878, 0.0
    %v883 = vpack.c.bf16 %v881, %v881
    %v884 = vpack.c.bf16 %v882, %v882
    %v885 = vld [vmem:[#allocation10] sm:$0xff]
    %v886 = vld [vmem:[#allocation10 + $0x8] sm:$0xff]
    %v887 = vld [vmem:[#allocation10 + $0x10] sm:$0xff]
    %v888 = vld [vmem:[#allocation10 + $0x18] sm:$0xff]
    %v889 = vld [vmem:[#allocation10 + $0x20] sm:$0xff]
    %v890 = vld [vmem:[#allocation10 + $0x28] sm:$0xff]
    %v891 = vld [vmem:[#allocation10 + $0x30] sm:$0xff]
    %v892 = vld [vmem:[#allocation10 + $0x38] sm:$0xff]
    %v893 = vld [vmem:[#allocation10 + $0x40] sm:$0xff]
    %v894 = vld [vmem:[#allocation10 + $0x48] sm:$0xff]
    %v895 = vld [vmem:[#allocation10 + $0x50] sm:$0xff]
    %v896 = vld [vmem:[#allocation10 + $0x58] sm:$0xff]
    %v897 = vld [vmem:[#allocation10 + $0x60] sm:$0xff]
    %v898 = vld [vmem:[#allocation10 + $0x68] sm:$0xff]
    %v899 = vld [vmem:[#allocation10 + $0x70] sm:$0xff]
    %v900 = vld [vmem:[#allocation10 + $0x78] sm:$0xff]
    %v901 = vld [vmem:[#allocation10 + $0x80] sm:$0xff]
    %v902 = vld [vmem:[#allocation10 + $0x88] sm:$0xff]
    %v903 = vld [vmem:[#allocation10 + $0x90] sm:$0xff]
    %v904 = vld [vmem:[#allocation10 + $0x98] sm:$0xff]
    %v905 = vld [vmem:[#allocation10 + $0xa0] sm:$0xff]
    %v906 = vld [vmem:[#allocation10 + $0xa8] sm:$0xff]
    %v907 = vld [vmem:[#allocation10 + $0xb0] sm:$0xff]
    %v908 = vld [vmem:[#allocation10 + $0xb8] sm:$0xff]
    %v909 = vld [vmem:[#allocation10 + $0xc0] sm:$0xff]
    %v910 = vld [vmem:[#allocation10 + $0xc8] sm:$0xff]
    %v911 = vld [vmem:[#allocation10 + $0xd0] sm:$0xff]
    %v912 = vld [vmem:[#allocation10 + $0xd8] sm:$0xff]
    %v913 = vld [vmem:[#allocation10 + $0xe0] sm:$0xff]
    %v914 = vld [vmem:[#allocation10 + $0xe8] sm:$0xff]
    %v915 = vld [vmem:[#allocation10 + $0xf0] sm:$0xff]
    %v916 = vld [vmem:[#allocation10 + $0xf8] sm:$0xff]
    %v917 = vld [vmem:[%s6] sm:$0x3]
    %v919 = vperm.slane %v917, 0
    %v920 = vperm.slane %v917, 1
    %v955 = vunpack.c.l.b16 %v885
    %v956 = vunpack.c.h.b16 %v885
    %v957 = vunpack.c.l.b16 %v886
    %v958 = vunpack.c.h.b16 %v886
    %v959 = vunpack.c.l.b16 %v887
    %v960 = vunpack.c.h.b16 %v887
    %v961 = vunpack.c.l.b16 %v888
    %v962 = vunpack.c.h.b16 %v888
    %v963 = vunpack.c.l.b16 %v889
    %v964 = vunpack.c.h.b16 %v889
    %v965 = vunpack.c.l.b16 %v890
    %v966 = vunpack.c.h.b16 %v890
    %v967 = vunpack.c.l.b16 %v891
    %v968 = vunpack.c.h.b16 %v891
    %v969 = vunpack.c.l.b16 %v892
    %v970 = vunpack.c.h.b16 %v892
    %v971 = vunpack.c.l.b16 %v893
    %v972 = vunpack.c.h.b16 %v893
    %v973 = vunpack.c.l.b16 %v894
    %v974 = vunpack.c.h.b16 %v894
    %v975 = vunpack.c.l.b16 %v895
    %v976 = vunpack.c.h.b16 %v895
    %v977 = vunpack.c.l.b16 %v896
    %v978 = vunpack.c.h.b16 %v896
    %v979 = vunpack.c.l.b16 %v897
    %v980 = vunpack.c.h.b16 %v897
    %v981 = vunpack.c.l.b16 %v898
    %v982 = vunpack.c.h.b16 %v898
    %v983 = vunpack.c.l.b16 %v899
    %v984 = vunpack.c.h.b16 %v899
    %v985 = vunpack.c.l.b16 %v900
    %v986 = vunpack.c.h.b16 %v900
    %v987 = vunpack.c.l.b16 %v901
    %v988 = vunpack.c.h.b16 %v901
    %v989 = vunpack.c.l.b16 %v902
    %v990 = vunpack.c.h.b16 %v902
    %v991 = vunpack.c.l.b16 %v903
    %v992 = vunpack.c.h.b16 %v903
    %v993 = vunpack.c.l.b16 %v904
    %v994 = vunpack.c.h.b16 %v904
    %v995 = vunpack.c.l.b16 %v905
    %v996 = vunpack.c.h.b16 %v905
    %v997 = vunpack.c.l.b16 %v906
    %v998 = vunpack.c.h.b16 %v906
    %v999 = vunpack.c.l.b16 %v907
    %v1000 = vunpack.c.h.b16 %v907
    %v1001 = vunpack.c.l.b16 %v908
    %v1002 = vunpack.c.h.b16 %v908
    %v1003 = vunpack.c.l.b16 %v909
    %v1004 = vunpack.c.h.b16 %v909
    %v1005 = vunpack.c.l.b16 %v910
    %v1006 = vunpack.c.h.b16 %v910
    %v1007 = vunpack.c.l.b16 %v911
    %v1008 = vunpack.c.h.b16 %v911
    %v1009 = vunpack.c.l.b16 %v912
    %v1010 = vunpack.c.h.b16 %v912
    %v1011 = vunpack.c.l.b16 %v913
    %v1012 = vunpack.c.h.b16 %v913
    %v1013 = vunpack.c.l.b16 %v914
    %v1014 = vunpack.c.h.b16 %v914
    %v1015 = vunpack.c.l.b16 %v915
    %v1016 = vunpack.c.h.b16 %v915
    %v1017 = vunpack.c.l.b16 %v916
    %v1018 = vunpack.c.h.b16 %v916
    %v1019 = vpack.c.b16 %v957, %v955
    %v1020 = vpack.c.b16 %v958, %v956
    %v1021 = vpack.c.b16 %v961, %v959
    %v1022 = vpack.c.b16 %v962, %v960
    %v1023 = vpack.c.b16 %v965, %v963
    %v1024 = vpack.c.b16 %v966, %v964
    %v1025 = vpack.c.b16 %v969, %v967
    %v1026 = vpack.c.b16 %v970, %v968
    %v1027 = vpack.c.b16 %v973, %v971
    %v1028 = vpack.c.b16 %v974, %v972
    %v1029 = vpack.c.b16 %v977, %v975
    %v1030 = vpack.c.b16 %v978, %v976
    %v1031 = vpack.c.b16 %v981, %v979
    %v1032 = vpack.c.b16 %v982, %v980
    %v1033 = vpack.c.b16 %v985, %v983
    %v1034 = vpack.c.b16 %v986, %v984
    %v1035 = vpack.c.b16 %v989, %v987
    %v1036 = vpack.c.b16 %v990, %v988
    %v1037 = vpack.c.b16 %v993, %v991
    %v1038 = vpack.c.b16 %v994, %v992
    %v1039 = vpack.c.b16 %v997, %v995
    %v1040 = vpack.c.b16 %v998, %v996
    %v1041 = vpack.c.b16 %v1001, %v999
    %v1042 = vpack.c.b16 %v1002, %v1000
    %v1043 = vpack.c.b16 %v1005, %v1003
    %v1044 = vpack.c.b16 %v1006, %v1004
    %v1045 = vpack.c.b16 %v1009, %v1007
    %v1046 = vpack.c.b16 %v1010, %v1008
    %v1047 = vpack.c.b16 %v1013, %v1011
    %v1048 = vpack.c.b16 %v1014, %v1012
    %v1049 = vpack.c.b16 %v1017, %v1015
    %v1050 = vpack.c.b16 %v1018, %v1016
    %1083 = vmatpush.bf16.msra.mxu0 %v1033
    %1084 = vmatpush.bf16.msra.mxu0 %v1031
    %1085 = vmatpush.bf16.msra.mxu0 %v1029
    %1086 = vmatpush.bf16.msra.mxu0 %v1027
    %1087 = vmatpush.bf16.msra.mxu0 %v1025
    %1088 = vmatpush.bf16.msra.mxu0 %v1023
    %1089 = vmatpush.bf16.msra.mxu0 %v1021
    %1090 = vmatpush.bf16.msra.mxu0 %v1019
    %1091 = vmatmul.bf16.gmra.mxu0 %v883
    %v1092 = vpop.f32.mrf.mxu0
    %v1093 = vadd.f32 %v919, %v1092
    %v1094 = vpop.f32.mrf.mxu0
    %1095 = vdwg.mxu0
    %1096 = vmatpush.bf16.msra.mxu0 %v1049
    %1097 = vmatpush.bf16.msra.mxu0 %v1047
    %1098 = vmatpush.bf16.msra.mxu0 %v1045
    %1099 = vmatpush.bf16.msra.mxu0 %v1043
    %1100 = vmatpush.bf16.msra.mxu0 %v1041
    %1101 = vmatpush.bf16.msra.mxu0 %v1039
    %1102 = vmatpush.bf16.msra.mxu0 %v1037
    %1103 = vmatpush.bf16.msra.mxu0 %v1035
    %1104 = vmatmul.bf16.gmra.mxu0 %v884
    %v1105 = vpop.f32.mrf.mxu0
    %v1106 = vadd.f32 %v1093, %v1105
    %v1107 = vpop.f32.mrf.mxu0
    %1108 = vdwg.mxu0
    %1109 = vmatpush.bf16.msra.mxu0 %v1034
    %1110 = vmatpush.bf16.msra.mxu0 %v1032
    %1111 = vmatpush.bf16.msra.mxu0 %v1030
    %1112 = vmatpush.bf16.msra.mxu0 %v1028
    %1113 = vmatpush.bf16.msra.mxu0 %v1026
    %1114 = vmatpush.bf16.msra.mxu0 %v1024
    %1115 = vmatpush.bf16.msra.mxu0 %v1022
    %1116 = vmatpush.bf16.msra.mxu0 %v1020
    %1117 = vmatmul.bf16.gmra.mxu0 %v883
    %v1118 = vpop.f32.mrf.mxu0
    %v1119 = vadd.f32 %v920, %v1118
    %v1120 = vpop.f32.mrf.mxu0
    %1121 = vdwg.mxu0
    %1122 = vmatpush.bf16.msra.mxu0 %v1050
    %1123 = vmatpush.bf16.msra.mxu0 %v1048
    %1124 = vmatpush.bf16.msra.mxu0 %v1046
    %1125 = vmatpush.bf16.msra.mxu0 %v1044
    %1126 = vmatpush.bf16.msra.mxu0 %v1042
    %1127 = vmatpush.bf16.msra.mxu0 %v1040
    %1128 = vmatpush.bf16.msra.mxu0 %v1038
    %1129 = vmatpush.bf16.msra.mxu0 %v1036
    %1130 = vmatmul.bf16.gmra.mxu0 %v884
    %v1131 = vpop.f32.mrf.mxu0
    %v1132 = vadd.f32 %v1119, %v1131
    %v1133 = vpop.f32.mrf.mxu0
    %1134 = vdwg.mxu0
    %v1135 = vmax.f32 %v1106, 0.0
    %v1136 = vmax.f32 %v1132, 0.0
    %v1137 = vpack.c.bf16 %v1135, %v1135
    %v1138 = vpack.c.bf16 %v1136, %v1136
    %v1139 = vld [vmem:[#allocation11] sm:$0xf]
    %v1140 = vld [vmem:[#allocation11 + $0x4] sm:$0xf]
    %v1141 = vld [vmem:[#allocation11 + $0x8] sm:$0xf]
    %v1142 = vld [vmem:[#allocation11 + $0xc] sm:$0xf]
    %v1143 = vld [vmem:[#allocation11 + $0x10] sm:$0xf]
    %v1144 = vld [vmem:[#allocation11 + $0x14] sm:$0xf]
    %v1145 = vld [vmem:[#allocation11 + $0x18] sm:$0xf]
    %v1146 = vld [vmem:[#allocation11 + $0x1c] sm:$0xf]
    %v1147 = vld [vmem:[#allocation11 + $0x20] sm:$0xf]
    %v1148 = vld [vmem:[#allocation11 + $0x24] sm:$0xf]
    %v1149 = vld [vmem:[#allocation11 + $0x28] sm:$0xf]
    %v1150 = vld [vmem:[#allocation11 + $0x2c] sm:$0xf]
    %v1151 = vld [vmem:[#allocation11 + $0x30] sm:$0xf]
    %v1152 = vld [vmem:[#allocation11 + $0x34] sm:$0xf]
    %v1153 = vld [vmem:[#allocation11 + $0x38] sm:$0xf]
    %v1154 = vld [vmem:[#allocation11 + $0x3c] sm:$0xf]
    %v1155 = vld [vmem:[#allocation11 + $0x40] sm:$0xf]
    %v1156 = vld [vmem:[#allocation11 + $0x44] sm:$0xf]
    %v1157 = vld [vmem:[#allocation11 + $0x48] sm:$0xf]
    %v1158 = vld [vmem:[#allocation11 + $0x4c] sm:$0xf]
    %v1159 = vld [vmem:[#allocation11 + $0x50] sm:$0xf]
    %v1160 = vld [vmem:[#allocation11 + $0x54] sm:$0xf]
    %v1161 = vld [vmem:[#allocation11 + $0x58] sm:$0xf]
    %v1162 = vld [vmem:[#allocation11 + $0x5c] sm:$0xf]
    %v1163 = vld [vmem:[#allocation11 + $0x60] sm:$0xf]
    %v1164 = vld [vmem:[#allocation11 + $0x64] sm:$0xf]
    %v1165 = vld [vmem:[#allocation11 + $0x68] sm:$0xf]
    %v1166 = vld [vmem:[#allocation11 + $0x6c] sm:$0xf]
    %v1167 = vld [vmem:[#allocation11 + $0x70] sm:$0xf]
    %v1168 = vld [vmem:[#allocation11 + $0x74] sm:$0xf]
    %v1169 = vld [vmem:[#allocation11 + $0x78] sm:$0xf]
    %v1170 = vld [vmem:[#allocation11 + $0x7c] sm:$0xf]
    %v1171 = vld [vmem:[%s8] sm:$0x1]
    %v1173 = vperm.slane %v1171, 0
    %v1207 = vunpack.c.l.b16 %v1139
    %v1208 = vunpack.c.l.b16 %v1140
    %v1209 = vunpack.c.l.b16 %v1141
    %v1210 = vunpack.c.l.b16 %v1142
    %v1211 = vunpack.c.l.b16 %v1143
    %v1212 = vunpack.c.l.b16 %v1144
    %v1213 = vunpack.c.l.b16 %v1145
    %v1214 = vunpack.c.l.b16 %v1146
    %v1215 = vunpack.c.l.b16 %v1147
    %v1216 = vunpack.c.l.b16 %v1148
    %v1217 = vunpack.c.l.b16 %v1149
    %v1218 = vunpack.c.l.b16 %v1150
    %v1219 = vunpack.c.l.b16 %v1151
    %v1220 = vunpack.c.l.b16 %v1152
    %v1221 = vunpack.c.l.b16 %v1153
    %v1222 = vunpack.c.l.b16 %v1154
    %v1223 = vunpack.c.l.b16 %v1155
    %v1224 = vunpack.c.l.b16 %v1156
    %v1225 = vunpack.c.l.b16 %v1157
    %v1226 = vunpack.c.l.b16 %v1158
    %v1227 = vunpack.c.l.b16 %v1159
    %v1228 = vunpack.c.l.b16 %v1160
    %v1229 = vunpack.c.l.b16 %v1161
    %v1230 = vunpack.c.l.b16 %v1162
    %v1231 = vunpack.c.l.b16 %v1163
    %v1232 = vunpack.c.l.b16 %v1164
    %v1233 = vunpack.c.l.b16 %v1165
    %v1234 = vunpack.c.l.b16 %v1166
    %v1235 = vunpack.c.l.b16 %v1167
    %v1236 = vunpack.c.l.b16 %v1168
    %v1237 = vunpack.c.l.b16 %v1169
    %v1238 = vunpack.c.l.b16 %v1170
    %v1239 = vpack.c.b16 %v1208, %v1207
    %v1240 = vpack.c.b16 %v1210, %v1209
    %v1241 = vpack.c.b16 %v1212, %v1211
    %v1242 = vpack.c.b16 %v1214, %v1213
    %v1243 = vpack.c.b16 %v1216, %v1215
    %v1244 = vpack.c.b16 %v1218, %v1217
    %v1245 = vpack.c.b16 %v1220, %v1219
    %v1246 = vpack.c.b16 %v1222, %v1221
    %v1247 = vpack.c.b16 %v1224, %v1223
    %v1248 = vpack.c.b16 %v1226, %v1225
    %v1249 = vpack.c.b16 %v1228, %v1227
    %v1250 = vpack.c.b16 %v1230, %v1229
    %v1251 = vpack.c.b16 %v1232, %v1231
    %v1252 = vpack.c.b16 %v1234, %v1233
    %v1253 = vpack.c.b16 %v1236, %v1235
    %v1254 = vpack.c.b16 %v1238, %v1237
    %1271 = vmatpush.bf16.msra.mxu0 %v1246
    %1272 = vmatpush.bf16.msra.mxu0 %v1245
    %1273 = vmatpush.bf16.msra.mxu0 %v1244
    %1274 = vmatpush.bf16.msra.mxu0 %v1243
    %1275 = vmatpush.bf16.msra.mxu0 %v1242
    %1276 = vmatpush.bf16.msra.mxu0 %v1241
    %1277 = vmatpush.bf16.msra.mxu0 %v1240
    %1278 = vmatpush.bf16.msra.mxu0 %v1239
    %1279 = vmatmul.bf16.gmra.mxu0 %v1137
    %v1280 = vpop.f32.mrf.mxu0
    %v1281 = vadd.f32 %v1173, %v1280
    %v1282 = vpop.f32.mrf.mxu0
    %1283 = vdwg.mxu0
    %1284 = vmatpush.bf16.msra.mxu0 %v1254
    %1285 = vmatpush.bf16.msra.mxu0 %v1253
    %1286 = vmatpush.bf16.msra.mxu0 %v1252
    %1287 = vmatpush.bf16.msra.mxu0 %v1251
    %1288 = vmatpush.bf16.msra.mxu0 %v1250
    %1289 = vmatpush.bf16.msra.mxu0 %v1249
    %1290 = vmatpush.bf16.msra.mxu0 %v1248
    %1291 = vmatpush.bf16.msra.mxu0 %v1247
    %1292 = vmatmul.bf16.gmra.mxu0 %v1138
    %v1293 = vpop.f32.mrf.mxu0
    %v1294 = vadd.f32 %v1281, %v1293
    %v1295 = vpop.f32.mrf.mxu0
    %1296 = vdwg.mxu0
    %1297 = vst [vmem:[#allocation13] sm:$0xff] %v1294
    // Predicated region
    $region62: #{tpu_custom_call.1} parent=1 // pred_check
      _
    $region63: #{tpu_custom_call.1} parent=1 // pred_check_branch
      %1299 = sbr.rel (0) target = $region65
    $region64: #{tpu_custom_call.1} parent=1 // pred_region
      %1301 = vsyncadd [#allocation4], 0
      %s1303 = sshll.u32 [#allocation13], 4
      %s1304 = int_to_ptr.vmem [resolvable:$true] %s1303
      %s1305 = sshll.u32 %s9, 4
      %s1306 = int_to_ptr.hbm [resolvable:$true] %s1305
      %1308 = dma.vmem_to_hbm [thread:$0]  %s1304, 128, %s1306, [#allocation4]
    $region65: #{tpu_custom_call.1} parent=1 // pred_fallthru
      _
    // Predicated region
    $region66: #{tpu_custom_call.1} parent=1 // pred_check
      _
    $region67: #{tpu_custom_call.1} parent=1 // pred_check_branch
      %1310 = sbr.rel (0) target = $region69
    $region68: #{tpu_custom_call.1} parent=1 // pred_region
      %1312 = dma.done [#allocation4], 128
    $region69: #{tpu_custom_call.1} parent=1 // pred_fallthru
      _
    %1313 = vsyncpa [#allocation3], 1
    %1314 = vsyncpa [#allocation6], 1
    %1315 = vsyncpa [#allocation9], 1
    %1316 = vsyncpa [#allocation12], 1
    %1317 = vsyncpa [#allocation4], 1

</llo_original>
